<compile_context>
chip_gen: v6e
topology: v6e:2x2x1
jax: 0.10.0
libtpu: 0.0.40
codegen_flags: <defaults>
</compile_context>

<pallas_src>
import functools

import jax
import jax.numpy as jnp
from jax.experimental import pallas as pl
from jax.experimental.pallas import tpu as pltpu


def _round_up(n, m):
    return (n + m - 1) // m * m


def _vmem_bytes(shape, dtype):
    """VMEM footprint of a 2-D array including (sublane, lane) tile padding."""
    itemsize = jnp.dtype(dtype).itemsize
    rows, cols = shape
    sub = max(8, 32 // itemsize)          # 8 for f32, 16 for bf16
    return _round_up(rows, sub) * _round_up(cols, 128) * itemsize


def sae_kernel(x_ref,
               w1_ref, b1_ref,
               w2_ref, b2_ref,
               w3_ref, b3_ref,
               w4_ref, b4_ref,
               o_ref):
    # x arrives f32 from HBM; cast in-vreg (VPU work, hidden under the DMA)
    # so fc1 runs on the bf16 MXU path with f32 accumulation.
    x = x_ref[...].astype(jnp.bfloat16)                               # (tb, Mp)
    # fc1 + sigmoid
    h = jax.nn.sigmoid(
        jnp.dot(x, w1_ref[...], preferred_element_type=jnp.float32)
        + b1_ref[...])                                                # (tb, 20) f32
    # fc2 + sigmoid (tiny, stays f32)
    h = jax.nn.sigmoid(
        jnp.dot(h, w2_ref[...], preferred_element_type=jnp.float32)
        + b2_ref[...])                                                # (tb, 10) f32
    # fc3 + sigmoid (tiny, stays f32)
    h = jax.nn.sigmoid(
        jnp.dot(h, w3_ref[...], preferred_element_type=jnp.float32)
        + b3_ref[...])                                                # (tb, 20) f32
    # fc4 (linear): cast the tiny activation to bf16 instead of widening the
    # (20, Mp) W4 tile to f32; accumulate f32, add f32 bias.
    y = (jnp.dot(h.astype(jnp.bfloat16), w4_ref[...],
                 preferred_element_type=jnp.float32)
         + b4_ref[...])                                               # (tb, Mp) f32
    o_ref[...] = y.astype(o_ref.dtype)


@functools.partial(jax.jit, static_argnames=("tile_b", "out_dtype"))
def sae_forward(x, params, *, tile_b=512, out_dtype=jnp.bfloat16):
    """x: (B, nb_movies) float32.  params: dict of transposed weights/biases."""
    B, M = x.shape

    # ---- layout ----------------------------------------------------------
    M_pad = _round_up(M, 128)             # lane-dense output / aligned streams
    out_itemsize = jnp.dtype(out_dtype).itemsize

    # ---- per-generation VMEM budget ---------------------------------------
    try:
        phys_vmem = int(pltpu.get_tpu_info().vmem_capacity_bytes)
    except Exception:                     # pragma: no cover - conservative default
        phys_vmem = 64 * 1024 * 1024      # v7x-class per-core VMEM
    budget = min(phys_vmem - 8 * 1024 * 1024, 100 * 1024 * 1024)

    # Weights / biases: constant index map + Buffered(1) -> single-buffered.
    weight_bytes = (
        _vmem_bytes((M_pad, 20), jnp.bfloat16) + _vmem_bytes((1, 20), jnp.float32)
        + _vmem_bytes((20, 10), jnp.float32) + _vmem_bytes((1, 10), jnp.float32)
        + _vmem_bytes((10, 20), jnp.float32) + _vmem_bytes((1, 20), jnp.float32)
        + _vmem_bytes((20, M_pad), jnp.bfloat16) + _vmem_bytes((1, M_pad), jnp.float32))
    # Pipelined per-batch-row cost: x tile (f32) + out tile, both double-buffered.
    row_bytes = 2 * M_pad * 4 + 2 * M_pad * out_itemsize
    slack = 2 * 1024 * 1024
    tb_cap = max(16, (budget - weight_bytes - slack) // row_bytes // 16 * 16)

    # Batch tile: multiple of 16 (bf16 out-tile sublane packing), within the
    # VMEM-derived cap, and small enough that the grid has >= 2 steps so both
    # v7x TensorCores get work.
    tb = max(16, min(_round_up(tile_b, 16), int(tb_cap), 1024))
    tb = min(tb, max(16, _round_up(-(-B // 2), 16)))
    B_pad = _round_up(B, tb)

    w1, b1 = params["w1"], params["b1"]   # (M, 20), (1, 20)
    w2, b2 = params["w2"], params["b2"]   # (20, 10), (1, 10)
    w3, b3 = params["w3"], params["b3"]   # (10, 20), (1, 20)
    w4, b4 = params["w4"], params["b4"]   # (20, M), (1, M)

    # x stays f32 (kernel casts in-vreg); only pad when shapes are not already
    # tile-aligned, so the common aligned case pays zero extra HBM passes.
    pad_b, pad_m = B_pad - B, M_pad - M
    xp = jnp.pad(x, ((0, pad_b), (0, pad_m))) if (pad_b or pad_m) else x
    # Big weight streams to bf16 (tiny vs. the x/out streams at real batch sizes).
    w1p = (jnp.pad(w1, ((0, pad_m), (0, 0))) if pad_m else w1).astype(jnp.bfloat16)
    w4p = (jnp.pad(w4, ((0, 0), (0, pad_m))) if pad_m else w4).astype(jnp.bfloat16)
    b4p = jnp.pad(b4, ((0, 0), (0, pad_m))) if pad_m else b4

    # ---- VMEM limit (capped below physical) -------------------------------
    vmem_need = weight_bytes + tb * row_bytes + slack
    vmem_limit = int(min(phys_vmem - 4 * 1024 * 1024,
                         max(32 * 1024 * 1024, vmem_need * 5 // 4)))

    buffered_once = pl.Buffered(1) if hasattr(pl, "Buffered") else None

    def const_spec(shape):
        # Whole-array block with a constant index map: DMA'd once; single
        # buffer (the default double buffer is wasted VMEM for constant blocks).
        if buffered_once is not None:
            return pl.BlockSpec(shape, lambda i: (0, 0), pipeline_mode=buffered_once)
        return pl.BlockSpec(shape, lambda i: (0, 0))

    grid_spec = pltpu.PrefetchScalarGridSpec(
        num_scalar_prefetch=0,
        grid=(B_pad // tb,),
        in_specs=[
            pl.BlockSpec((tb, M_pad), lambda i: (i, 0)),   # x tile (f32)
            const_spec(w1p.shape), const_spec(b1.shape),
            const_spec(w2.shape), const_spec(b2.shape),
            const_spec(w3.shape), const_spec(b3.shape),
            const_spec(w4p.shape), const_spec(b4p.shape),
        ],
        out_specs=pl.BlockSpec((tb, M_pad), lambda i: (i, 0)),
    )

    out_padded = pl.pallas_call(
        sae_kernel,
        out_shape=jax.ShapeDtypeStruct((B_pad, M_pad), out_dtype),
        grid_spec=grid_spec,
        compiler_params=pltpu.CompilerParams(
            dimension_semantics=("parallel",),
            vmem_limit_bytes=vmem_limit),
    )(xp, w1p, b1, w2, b2, w3, b3, w4p, b4p)

    # Slice only when we actually padded (aligned shapes return the kernel
    # output directly with no extra HBM pass).
    if pad_b or pad_m:
        return out_padded[:B, :M]
    return out_padded


def init_params(key, nb_movies):
    """Deterministic init matching nn.Linear shapes (weights stored transposed)."""
    dims = [(nb_movies, 20), (20, 10), (10, 20), (20, nb_movies)]
    params = {}
    for idx, (fan_in, fan_out) in enumerate(dims, start=1):
        key, kw, kb = jax.random.split(key, 3)
        bound = 1.0 / jnp.sqrt(jnp.float32(fan_in))
        # PyTorch Linear weight is (out, in); we store (in, out) for x @ W.
        params[f"w{idx}"] = jax.random.uniform(
            kw, (fan_in, fan_out), jnp.float32, -bound, bound)
        params[f"b{idx}"] = jax.random.uniform(
            kb, (1, fan_out), jnp.float32, -bound, bound)
    return params


def sae_reference(x, params):
    """Pure-JAX reference mirroring the kernel's bf16 streaming / casts."""
    f32, bf16 = jnp.float32, jnp.bfloat16

    def dot_bf16(a, b):
        return jnp.dot(a.astype(bf16), b.astype(bf16), preferred_element_type=f32)

    h = jax.nn.sigmoid(dot_bf16(x, params["w1"]) + params["b1"])
    h = jax.nn.sigmoid(
        jnp.dot(h, params["w2"], preferred_element_type=f32) + params["b2"])
    h = jax.nn.sigmoid(
        jnp.dot(h, params["w3"], preferred_element_type=f32) + params["b3"])
    return dot_bf16(h, params["w4"]) + params["b4"]


if __name__ == "__main__":
    nb_movies = 32     # small synthetic "number of movies"
    batch = 40         # small batch of users (exercises the padded-tile path)

    key = jax.random.PRNGKey(0)
    key, kx = jax.random.split(key)
    params = init_params(key, nb_movies)

    # synthetic user-movie rating matrix (ratings in [0, 5])
    x = jax.random.uniform(kx, (batch, nb_movies), jnp.float32, 0.0, 5.0)

    # small tile here so the grid has several steps even at this toy batch;
    # at production batch sizes leave the default tile_b=512 (VMEM-clamped).
    out = sae_forward(x, params, tile_b=16)
    out = jax.block_until_ready(out)

    ref = sae_reference(x, params)
    out_f32 = out.astype(jnp.float32)
    assert out.shape == (batch, nb_movies)
    assert out.dtype == jnp.bfloat16
    assert jnp.allclose(out_f32, ref, atol=5e-2, rtol=5e-2), (
        float(jnp.max(jnp.abs(out_f32 - ref))))

    print("KERNEL_OK")
</pallas_src>

<mosaic_0001>
module attributes {stable_mosaic.version = 11 : i64} {
  func.func @sae_kernel(%arg0: i32, %arg1: memref<16x128xf32, #tpu.memory_space<vmem>>, %arg2: memref<128x20xbf16, #tpu.memory_space<vmem>>, %arg3: memref<1x20xf32, #tpu.memory_space<vmem>>, %arg4: memref<20x10xf32, #tpu.memory_space<vmem>>, %arg5: memref<1x10xf32, #tpu.memory_space<vmem>>, %arg6: memref<10x20xf32, #tpu.memory_space<vmem>>, %arg7: memref<1x20xf32, #tpu.memory_space<vmem>>, %arg8: memref<20x128xbf16, #tpu.memory_space<vmem>>, %arg9: memref<1x128xf32, #tpu.memory_space<vmem>>, %arg10: memref<16x128xbf16, #tpu.memory_space<vmem>>) attributes {dimension_semantics = [#tpu.dimension_semantics<parallel>], iteration_bounds = array<i64: 3>, scalar_prefetch = 0 : i64, scratch_operands = 0 : i64, tpu.core_type = #tpu.core_type<tc>, window_params = [{transform_indices = @transform_0, window_bounds = array<i64: 16, 128>}, {pipeline_mode = #tpu.pipeline_mode<synchronous>, transform_indices = @transform_1, window_bounds = array<i64: 128, 20>}, {pipeline_mode = #tpu.pipeline_mode<synchronous>, transform_indices = @transform_2, window_bounds = array<i64: 1, 20>}, {pipeline_mode = #tpu.pipeline_mode<synchronous>, transform_indices = @transform_3, window_bounds = array<i64: 20, 10>}, {pipeline_mode = #tpu.pipeline_mode<synchronous>, transform_indices = @transform_4, window_bounds = array<i64: 1, 10>}, {pipeline_mode = #tpu.pipeline_mode<synchronous>, transform_indices = @transform_5, window_bounds = array<i64: 10, 20>}, {pipeline_mode = #tpu.pipeline_mode<synchronous>, transform_indices = @transform_6, window_bounds = array<i64: 1, 20>}, {pipeline_mode = #tpu.pipeline_mode<synchronous>, transform_indices = @transform_7, window_bounds = array<i64: 20, 128>}, {pipeline_mode = #tpu.pipeline_mode<synchronous>, transform_indices = @transform_8, window_bounds = array<i64: 1, 128>}, {transform_indices = @transform_9, window_bounds = array<i64: 16, 128>}]} {
    %c0 = arith.constant 0 : index
    %c0_0 = arith.constant 0 : index
    %0 = vector.load %arg1[%c0, %c0_0] : memref<16x128xf32, #tpu.memory_space<vmem>>, vector<16x128xf32>
    %1 = arith.truncf %0 : vector<16x128xf32> to vector<16x128xbf16>
    %c0_1 = arith.constant 0 : index
    %c0_2 = arith.constant 0 : index
    %2 = vector.load %arg2[%c0_1, %c0_2] : memref<128x20xbf16, #tpu.memory_space<vmem>>, vector<128x20xbf16>
    %cst = arith.constant dense<0.000000e+00> : vector<16x20xf32>
    %3 = tpu.matmul %1, %2, %cst {dimension_numbers = #tpu.dot_dimension_numbers<[1], [0], [0], [1], [0, 0, 1, 1], [], []>} : vector<16x128xbf16>, vector<128x20xbf16>, vector<16x20xf32> -> vector<16x20xf32>
    %c0_3 = arith.constant 0 : index
    %c0_4 = arith.constant 0 : index
    %4 = vector.load %arg3[%c0_3, %c0_4] : memref<1x20xf32, #tpu.memory_space<vmem>>, vector<1x20xf32>
    %5 = vector.broadcast %4 : vector<1x20xf32> to vector<16x20xf32>
    %6 = arith.addf %3, %5 : vector<16x20xf32>
    %7 = arith.negf %6 : vector<16x20xf32>
    %8 = math.exp %7 : vector<16x20xf32>
    %cst_5 = arith.constant 1.000000e+00 : f32
    %9 = vector.broadcast %cst_5 : f32 to vector<16x20xf32>
    %10 = arith.addf %9, %8 : vector<16x20xf32>
    %11 = arith.divf %9, %10 : vector<16x20xf32>
    %c0_6 = arith.constant 0 : index
    %c0_7 = arith.constant 0 : index
    %12 = vector.load %arg4[%c0_6, %c0_7] : memref<20x10xf32, #tpu.memory_space<vmem>>, vector<20x10xf32>
    %cst_8 = arith.constant dense<0.000000e+00> : vector<16x10xf32>
    %13 = tpu.matmul %11, %12, %cst_8 {dimension_numbers = #tpu.dot_dimension_numbers<[1], [0], [0], [1], [0, 0, 1, 1], [], []>} : vector<16x20xf32>, vector<20x10xf32>, vector<16x10xf32> -> vector<16x10xf32>
    %c0_9 = arith.constant 0 : index
    %c0_10 = arith.constant 0 : index
    %14 = vector.load %arg5[%c0_9, %c0_10] : memref<1x10xf32, #tpu.memory_space<vmem>>, vector<1x10xf32>
    %15 = vector.broadcast %14 : vector<1x10xf32> to vector<16x10xf32>
    %16 = arith.addf %13, %15 : vector<16x10xf32>
    %17 = arith.negf %16 : vector<16x10xf32>
    %18 = math.exp %17 : vector<16x10xf32>
    %cst_11 = arith.constant 1.000000e+00 : f32
    %19 = vector.broadcast %cst_11 : f32 to vector<16x10xf32>
    %20 = arith.addf %19, %18 : vector<16x10xf32>
    %21 = arith.divf %19, %20 : vector<16x10xf32>
    %c0_12 = arith.constant 0 : index
    %c0_13 = arith.constant 0 : index
    %22 = vector.load %arg6[%c0_12, %c0_13] : memref<10x20xf32, #tpu.memory_space<vmem>>, vector<10x20xf32>
    %cst_14 = arith.constant dense<0.000000e+00> : vector<16x20xf32>
    %23 = tpu.matmul %21, %22, %cst_14 {dimension_numbers = #tpu.dot_dimension_numbers<[1], [0], [0], [1], [0, 0, 1, 1], [], []>} : vector<16x10xf32>, vector<10x20xf32>, vector<16x20xf32> -> vector<16x20xf32>
    %c0_15 = arith.constant 0 : index
    %c0_16 = arith.constant 0 : index
    %24 = vector.load %arg7[%c0_15, %c0_16] : memref<1x20xf32, #tpu.memory_space<vmem>>, vector<1x20xf32>
    %25 = vector.broadcast %24 : vector<1x20xf32> to vector<16x20xf32>
    %26 = arith.addf %23, %25 : vector<16x20xf32>
    %27 = arith.negf %26 : vector<16x20xf32>
    %28 = math.exp %27 : vector<16x20xf32>
    %cst_17 = arith.constant 1.000000e+00 : f32
    %29 = vector.broadcast %cst_17 : f32 to vector<16x20xf32>
    %30 = arith.addf %29, %28 : vector<16x20xf32>
    %31 = arith.divf %29, %30 : vector<16x20xf32>
    %32 = arith.truncf %31 : vector<16x20xf32> to vector<16x20xbf16>
    %c0_18 = arith.constant 0 : index
    %c0_19 = arith.constant 0 : index
    %33 = vector.load %arg8[%c0_18, %c0_19] : memref<20x128xbf16, #tpu.memory_space<vmem>>, vector<20x128xbf16>
    %cst_20 = arith.constant dense<0.000000e+00> : vector<16x128xf32>
    %34 = tpu.matmul %32, %33, %cst_20 {dimension_numbers = #tpu.dot_dimension_numbers<[1], [0], [0], [1], [0, 0, 1, 1], [], []>} : vector<16x20xbf16>, vector<20x128xbf16>, vector<16x128xf32> -> vector<16x128xf32>
    %c0_21 = arith.constant 0 : index
    %c0_22 = arith.constant 0 : index
    %35 = vector.load %arg9[%c0_21, %c0_22] : memref<1x128xf32, #tpu.memory_space<vmem>>, vector<1x128xf32>
    %36 = vector.broadcast %35 : vector<1x128xf32> to vector<16x128xf32>
    %37 = arith.addf %34, %36 : vector<16x128xf32>
    %38 = arith.truncf %37 : vector<16x128xf32> to vector<16x128xbf16>
    %c0_23 = arith.constant 0 : index
    %c0_24 = arith.constant 0 : index
    %39 = vector.load %arg10[%c0_23, %c0_24] : memref<16x128xbf16, #tpu.memory_space<vmem>>, vector<16x128xbf16>
    tpu.vector_store %arg10[%c0_23, %c0_24], %38 {strides = array<i32>} : memref<16x128xbf16, #tpu.memory_space<vmem>>, vector<16x128xbf16>,
    return
  }
  func.func @transform_0(%arg0: i32) -> (i32, i32) {
    %c0_i32 = arith.constant 0 : i32
    %c0_i32_0 = arith.constant 0 : i32
    return %arg0, %c0_i32 : i32, i32
  }
  func.func @transform_1(%arg0: i32) -> (i32, i32) {
    %c0_i32 = arith.constant 0 : i32
    %c0_i32_0 = arith.constant 0 : i32
    %c0_i32_1 = arith.constant 0 : i32
    return %c0_i32, %c0_i32_0 : i32, i32
  }
  func.func @transform_2(%arg0: i32) -> (i32, i32) {
    %c0_i32 = arith.constant 0 : i32
    %c0_i32_0 = arith.constant 0 : i32
    %c0_i32_1 = arith.constant 0 : i32
    return %c0_i32, %c0_i32_0 : i32, i32
  }
  func.func @transform_3(%arg0: i32) -> (i32, i32) {
    %c0_i32 = arith.constant 0 : i32
    %c0_i32_0 = arith.constant 0 : i32
    %c0_i32_1 = arith.constant 0 : i32
    return %c0_i32, %c0_i32_0 : i32, i32
  }
  func.func @transform_4(%arg0: i32) -> (i32, i32) {
    %c0_i32 = arith.constant 0 : i32
    %c0_i32_0 = arith.constant 0 : i32
    %c0_i32_1 = arith.constant 0 : i32
    return %c0_i32, %c0_i32_0 : i32, i32
  }
  func.func @transform_5(%arg0: i32) -> (i32, i32) {
    %c0_i32 = arith.constant 0 : i32
    %c0_i32_0 = arith.constant 0 : i32
    %c0_i32_1 = arith.constant 0 : i32
    return %c0_i32, %c0_i32_0 : i32, i32
  }
  func.func @transform_6(%arg0: i32) -> (i32, i32) {
    %c0_i32 = arith.constant 0 : i32
    %c0_i32_0 = arith.constant 0 : i32
    %c0_i32_1 = arith.constant 0 : i32
    return %c0_i32, %c0_i32_0 : i32, i32
  }
  func.func @transform_7(%arg0: i32) -> (i32, i32) {
    %c0_i32 = arith.constant 0 : i32
    %c0_i32_0 = arith.constant 0 : i32
    %c0_i32_1 = arith.constant 0 : i32
    return %c0_i32, %c0_i32_0 : i32, i32
  }
  func.func @transform_8(%arg0: i32) -> (i32, i32) {
    %c0_i32 = arith.constant 0 : i32
    %c0_i32_0 = arith.constant 0 : i32
    %c0_i32_1 = arith.constant 0 : i32
    return %c0_i32, %c0_i32_0 : i32, i32
  }
  func.func @transform_9(%arg0: i32) -> (i32, i32) {
    %c0_i32 = arith.constant 0 : i32
    %c0_i32_0 = arith.constant 0 : i32
    return %arg0, %c0_i32 : i32, i32
  }
}

</mosaic_0001>

<llo_original>
// kernel: sae_forward.1
$region0: #{sae_forward.1}
  #allocation0 [shape = 'u32[]', space=smem, size = 0x4, offset = 0x4, fixed_abs, tag = 'smem constant byte address 0x4 - core index']
  #allocation1 [shape = 'u32[144,128]{1,0:T(1,128)}', space=vmem, size = 0x12000, scoped, tag = 'internal scratch']
  %s0 = inlined_call_operand.vmem [shape: f32[48,128], index: 0, kind: input, shape index: {}]
  %s1 = inlined_call_operand.vmem [shape: bf16[128,20], index: 1, kind: input, shape index: {}]
  %s2 = inlined_call_operand.vmem [shape: f32[1,20], index: 2, kind: input, shape index: {}]
  %s3 = inlined_call_operand.vmem [shape: f32[20,10], index: 3, kind: input, shape index: {}]
  %s4 = inlined_call_operand.vmem [shape: f32[1,10], index: 4, kind: input, shape index: {}]
  %s5 = inlined_call_operand.vmem [shape: f32[10,20], index: 5, kind: input, shape index: {}]
  %s6 = inlined_call_operand.vmem [shape: f32[1,20], index: 6, kind: input, shape index: {}]
  %s7 = inlined_call_operand.vmem [shape: bf16[20,128], index: 7, kind: input, shape index: {}]
  %s8 = inlined_call_operand.vmem [shape: f32[1,128], index: 8, kind: input, shape index: {}]
  %s9 = inlined_call_operand.vmem [shape: bf16[48,128], index: 9, kind: output, shape index: {}]
  %s10 = sld [smem:[#allocation0]]
  $region69: #{sae_forward.1} parent=0
    _
  %s12 = ssub.s32 1, %s10
  %s13 = scalar_select 0, %s12, %s10
  loop: start=0, step=1, limit=5
  $region2: #{sae_forward.1} parent=0 // loop_pre_header
    _
  $region3: #{sae_forward.1} parent=0 // loop_header
    %s15 = sphi 0, %s19
    %p16 = scmp.ge.s32.totalorder %s15, 5
    %s25 = sphi 0, %s27
    %s28 = sphi 0, %s25
    %s29 = sphi 0, %s28
    %s45 = sphi 0, %s29
    %s49 = sphi 0, %s49
    %s51 = sphi 0, %s49
    %s52 = sphi 0, %s51
    %s66 = sphi 0, %s52
    %s70 = sphi 0, %s70
    %s72 = sphi 0, %s70
    %s73 = sphi 0, %s72
    %s87 = sphi 0, %s73
    %s91 = sphi 0, %s91
    %s93 = sphi 0, %s91
    %s94 = sphi 0, %s93
    %s108 = sphi 0, %s94
    %s112 = sphi 0, %s112
    %s114 = sphi 0, %s112
    %s115 = sphi 0, %s114
    %s129 = sphi 0, %s115
    %s133 = sphi 0, %s133
    %s135 = sphi 0, %s133
    %s136 = sphi 0, %s135
    %s150 = sphi 0, %s136
    %s154 = sphi 0, %s154
    %s156 = sphi 0, %s154
    %s157 = sphi 0, %s156
    %s171 = sphi 0, %s157
    %s175 = sphi 0, %s175
    %s177 = sphi 0, %s175
    %s178 = sphi 0, %s177
    %s192 = sphi 0, %s178
    %s196 = sphi 0, %s196
    %s198 = sphi 0, %s196
    %s199 = sphi 0, %s198
    %s213 = sphi 0, %s199
    %s219 = sphi 0, %s221
    %s222 = sphi 0, %s219
    %s223 = sphi 0, %s222
    %s239 = sphi 0, %s223
  $region4: #{sae_forward.1} parent=0 // loop_header_branch
    %18 = sbr.rel (%p16) target = $region8
  $region5: #{sae_forward.1} parent=0 // loop_body
    %s20 = ssub.s32 %s15, 1
    %s21 = ssub.s32 %s15, 2
    %s22 = sadd.s32 %s15, 1
    %s23 = ssub.s32 %s15, %s22
    %p24 = scmp.eq.s32.totalorder %s23, 0
    %s26 = sadd.s32 %s25, 1
    %s27 = scalar_select %p24, %s25, %s26
    %p30 = pneg %p24
    %p31 = scmp.eq.s32.totalorder %s15, 2
    %p32 = por %p30, %p31
    %p33 = scmp.ne.s32.totalorder %s25, %s28
    %p34 = scmp.eq.s32.totalorder %s15, 0
    %p35 = por %p33, %p34
    %p36 = scmp.ne.s32.totalorder %s25, %s28
    %p37 = scmp.eq.s32.totalorder %s20, 2
    %p38 = por %p36, %p37
    %p39 = scmp.ne.s32.totalorder %s28, %s29
    %p40 = scmp.eq.s32.totalorder %s20, 0
    %p41 = por %p39, %p40
    %p42 = scmp.ne.s32.totalorder %s28, %s29
    %p43 = scmp.eq.s32.totalorder %s21, 2
    %p44 = por %p42, %p43
    %p46 = scmp.ne.s32.totalorder %s29, %s45
    %p47 = scmp.eq.s32.totalorder %s21, 0
    %p48 = por %p46, %p47
    %s50 = sadd.s32 %s49, 1
    %p53 = scmp.eq.s32.totalorder %s15, 2
    %p54 = scmp.ne.s32.totalorder %s49, %s51
    %p55 = scmp.eq.s32.totalorder %s15, 0
    %p56 = por %p54, %p55
    %p57 = scmp.ne.s32.totalorder %s49, %s51
    %p58 = scmp.eq.s32.totalorder %s20, 2
    %p59 = por %p57, %p58
    %p60 = scmp.ne.s32.totalorder %s51, %s52
    %p61 = scmp.eq.s32.totalorder %s20, 0
    %p62 = por %p60, %p61
    %p63 = scmp.ne.s32.totalorder %s51, %s52
    %p64 = scmp.eq.s32.totalorder %s21, 2
    %p65 = por %p63, %p64
    %p67 = scmp.ne.s32.totalorder %s52, %s66
    %p68 = scmp.eq.s32.totalorder %s21, 0
    %p69 = por %p67, %p68
    %s71 = sadd.s32 %s70, 1
    %p74 = scmp.eq.s32.totalorder %s15, 2
    %p75 = scmp.ne.s32.totalorder %s70, %s72
    %p76 = scmp.eq.s32.totalorder %s15, 0
    %p77 = por %p75, %p76
    %p78 = scmp.ne.s32.totalorder %s70, %s72
    %p79 = scmp.eq.s32.totalorder %s20, 2
    %p80 = por %p78, %p79
    %p81 = scmp.ne.s32.totalorder %s72, %s73
    %p82 = scmp.eq.s32.totalorder %s20, 0
    %p83 = por %p81, %p82
    %p84 = scmp.ne.s32.totalorder %s72, %s73
    %p85 = scmp.eq.s32.totalorder %s21, 2
    %p86 = por %p84, %p85
    %p88 = scmp.ne.s32.totalorder %s73, %s87
    %p89 = scmp.eq.s32.totalorder %s21, 0
    %p90 = por %p88, %p89
    %s92 = sadd.s32 %s91, 1
    %p95 = scmp.eq.s32.totalorder %s15, 2
    %p96 = scmp.ne.s32.totalorder %s91, %s93
    %p97 = scmp.eq.s32.totalorder %s15, 0
    %p98 = por %p96, %p97
    %p99 = scmp.ne.s32.totalorder %s91, %s93
    %p100 = scmp.eq.s32.totalorder %s20, 2
    %p101 = por %p99, %p100
    %p102 = scmp.ne.s32.totalorder %s93, %s94
    %p103 = scmp.eq.s32.totalorder %s20, 0
    %p104 = por %p102, %p103
    %p105 = scmp.ne.s32.totalorder %s93, %s94
    %p106 = scmp.eq.s32.totalorder %s21, 2
    %p107 = por %p105, %p106
    %p109 = scmp.ne.s32.totalorder %s94, %s108
    %p110 = scmp.eq.s32.totalorder %s21, 0
    %p111 = por %p109, %p110
    %s113 = sadd.s32 %s112, 1
    %p116 = scmp.eq.s32.totalorder %s15, 2
    %p117 = scmp.ne.s32.totalorder %s112, %s114
    %p118 = scmp.eq.s32.totalorder %s15, 0
    %p119 = por %p117, %p118
    %p120 = scmp.ne.s32.totalorder %s112, %s114
    %p121 = scmp.eq.s32.totalorder %s20, 2
    %p122 = por %p120, %p121
    %p123 = scmp.ne.s32.totalorder %s114, %s115
    %p124 = scmp.eq.s32.totalorder %s20, 0
    %p125 = por %p123, %p124
    %p126 = scmp.ne.s32.totalorder %s114, %s115
    %p127 = scmp.eq.s32.totalorder %s21, 2
    %p128 = por %p126, %p127
    %p130 = scmp.ne.s32.totalorder %s115, %s129
    %p131 = scmp.eq.s32.totalorder %s21, 0
    %p132 = por %p130, %p131
    %s134 = sadd.s32 %s133, 1
    %p137 = scmp.eq.s32.totalorder %s15, 2
    %p138 = scmp.ne.s32.totalorder %s133, %s135
    %p139 = scmp.eq.s32.totalorder %s15, 0
    %p140 = por %p138, %p139
    %p141 = scmp.ne.s32.totalorder %s133, %s135
    %p142 = scmp.eq.s32.totalorder %s20, 2
    %p143 = por %p141, %p142
    %p144 = scmp.ne.s32.totalorder %s135, %s136
    %p145 = scmp.eq.s32.totalorder %s20, 0
    %p146 = por %p144, %p145
    %p147 = scmp.ne.s32.totalorder %s135, %s136
    %p148 = scmp.eq.s32.totalorder %s21, 2
    %p149 = por %p147, %p148
    %p151 = scmp.ne.s32.totalorder %s136, %s150
    %p152 = scmp.eq.s32.totalorder %s21, 0
    %p153 = por %p151, %p152
    %s155 = sadd.s32 %s154, 1
    %p158 = scmp.eq.s32.totalorder %s15, 2
    %p159 = scmp.ne.s32.totalorder %s154, %s156
    %p160 = scmp.eq.s32.totalorder %s15, 0
    %p161 = por %p159, %p160
    %p162 = scmp.ne.s32.totalorder %s154, %s156
    %p163 = scmp.eq.s32.totalorder %s20, 2
    %p164 = por %p162, %p163
    %p165 = scmp.ne.s32.totalorder %s156, %s157
    %p166 = scmp.eq.s32.totalorder %s20, 0
    %p167 = por %p165, %p166
    %p168 = scmp.ne.s32.totalorder %s156, %s157
    %p169 = scmp.eq.s32.totalorder %s21, 2
    %p170 = por %p168, %p169
    %p172 = scmp.ne.s32.totalorder %s157, %s171
    %p173 = scmp.eq.s32.totalorder %s21, 0
    %p174 = por %p172, %p173
    %s176 = sadd.s32 %s175, 1
    %p179 = scmp.eq.s32.totalorder %s15, 2
    %p180 = scmp.ne.s32.totalorder %s175, %s177
    %p181 = scmp.eq.s32.totalorder %s15, 0
    %p182 = por %p180, %p181
    %p183 = scmp.ne.s32.totalorder %s175, %s177
    %p184 = scmp.eq.s32.totalorder %s20, 2
    %p185 = por %p183, %p184
    %p186 = scmp.ne.s32.totalorder %s177, %s178
    %p187 = scmp.eq.s32.totalorder %s20, 0
    %p188 = por %p186, %p187
    %p189 = scmp.ne.s32.totalorder %s177, %s178
    %p190 = scmp.eq.s32.totalorder %s21, 2
    %p191 = por %p189, %p190
    %p193 = scmp.ne.s32.totalorder %s178, %s192
    %p194 = scmp.eq.s32.totalorder %s21, 0
    %p195 = por %p193, %p194
    %s197 = sadd.s32 %s196, 1
    %p200 = scmp.eq.s32.totalorder %s15, 2
    %p201 = scmp.ne.s32.totalorder %s196, %s198
    %p202 = scmp.eq.s32.totalorder %s15, 0
    %p203 = por %p201, %p202
    %p204 = scmp.ne.s32.totalorder %s196, %s198
    %p205 = scmp.eq.s32.totalorder %s20, 2
    %p206 = por %p204, %p205
    %p207 = scmp.ne.s32.totalorder %s198, %s199
    %p208 = scmp.eq.s32.totalorder %s20, 0
    %p209 = por %p207, %p208
    %p210 = scmp.ne.s32.totalorder %s198, %s199
    %p211 = scmp.eq.s32.totalorder %s21, 2
    %p212 = por %p210, %p211
    %p214 = scmp.ne.s32.totalorder %s199, %s213
    %p215 = scmp.eq.s32.totalorder %s21, 0
    %p216 = por %p214, %p215
    %s217 = ssub.s32 %s15, %s22
    %p218 = scmp.eq.s32.totalorder %s217, 0
    %s220 = sadd.s32 %s219, 1
    %s221 = scalar_select %p218, %s219, %s220
    %p224 = pneg %p218
    %p225 = scmp.eq.s32.totalorder %s15, 2
    %p226 = por %p224, %p225
    %p227 = scmp.ne.s32.totalorder %s219, %s222
    %p228 = scmp.eq.s32.totalorder %s15, 0
    %p229 = por %p227, %p228
    %p230 = scmp.ne.s32.totalorder %s219, %s222
    %p231 = scmp.eq.s32.totalorder %s20, 2
    %p232 = por %p230, %p231
    %p233 = scmp.ne.s32.totalorder %s222, %s223
    %p234 = scmp.eq.s32.totalorder %s20, 0
    %p235 = por %p233, %p234
    %p236 = scmp.ne.s32.totalorder %s222, %s223
    %p237 = scmp.eq.s32.totalorder %s21, 2
    %p238 = por %p236, %p237
    %p240 = scmp.ne.s32.totalorder %s223, %s239
    %p241 = scmp.eq.s32.totalorder %s21, 0
    %p242 = por %p240, %p241
    %p243 = scmp.le.s32.totalorder 1, %s15
    %p244 = scmp.lt.s32.totalorder %s15, 4
    %p245 = pnand %p243, %p244
    %p246 = pneg %p245
    // Predicated region
    $region9: #{sae_forward.1} parent=5 // pred_check
      _
    $region10: #{sae_forward.1} parent=5 // pred_check_branch
      %248 = sbr.rel (%p245) target = $region12
    $region11: #{sae_forward.1} parent=5 // pred_region
      %s249 = ssub.s32 %s15, 1
      // Predicated region
      $region13: #{sae_forward.1} parent=11 // pred_check
        %p250 = pneg %p62
      $region14: #{sae_forward.1} parent=11 // pred_check_branch
        %252 = sbr.rel (%p250) target = $region16
      $region15: #{sae_forward.1} parent=11 // pred_region
        _
      $region16: #{sae_forward.1} parent=11 // pred_fallthru
        _
      // Predicated region
      $region17: #{sae_forward.1} parent=11 // pred_check
        %p253 = pneg %p83
      $region18: #{sae_forward.1} parent=11 // pred_check_branch
        %255 = sbr.rel (%p253) target = $region20
      $region19: #{sae_forward.1} parent=11 // pred_region
        _
      $region20: #{sae_forward.1} parent=11 // pred_fallthru
        _
      // Predicated region
      $region21: #{sae_forward.1} parent=11 // pred_check
        %p256 = pneg %p104
      $region22: #{sae_forward.1} parent=11 // pred_check_branch
        %258 = sbr.rel (%p256) target = $region24
      $region23: #{sae_forward.1} parent=11 // pred_region
        _
      $region24: #{sae_forward.1} parent=11 // pred_fallthru
        _
      // Predicated region
      $region25: #{sae_forward.1} parent=11 // pred_check
        %p259 = pneg %p125
      $region26: #{sae_forward.1} parent=11 // pred_check_branch
        %261 = sbr.rel (%p259) target = $region28
      $region27: #{sae_forward.1} parent=11 // pred_region
        _
      $region28: #{sae_forward.1} parent=11 // pred_fallthru
        _
      // Predicated region
      $region29: #{sae_forward.1} parent=11 // pred_check
        %p262 = pneg %p146
      $region30: #{sae_forward.1} parent=11 // pred_check_branch
        %264 = sbr.rel (%p262) target = $region32
      $region31: #{sae_forward.1} parent=11 // pred_region
        _
      $region32: #{sae_forward.1} parent=11 // pred_fallthru
        _
      // Predicated region
      $region33: #{sae_forward.1} parent=11 // pred_check
        %p265 = pneg %p167
      $region34: #{sae_forward.1} parent=11 // pred_check_branch
        %267 = sbr.rel (%p265) target = $region36
      $region35: #{sae_forward.1} parent=11 // pred_region
        _
      $region36: #{sae_forward.1} parent=11 // pred_fallthru
        _
      // Predicated region
      $region37: #{sae_forward.1} parent=11 // pred_check
        %p268 = pneg %p188
      $region38: #{sae_forward.1} parent=11 // pred_check_branch
        %270 = sbr.rel (%p268) target = $region40
      $region39: #{sae_forward.1} parent=11 // pred_region
        _
      $region40: #{sae_forward.1} parent=11 // pred_fallthru
        _
      // Predicated region
      $region41: #{sae_forward.1} parent=11 // pred_check
        %p271 = pneg %p209
      $region42: #{sae_forward.1} parent=11 // pred_check_branch
        %273 = sbr.rel (%p271) target = $region44
      $region43: #{sae_forward.1} parent=11 // pred_region
        _
      $region44: #{sae_forward.1} parent=11 // pred_fallthru
        _
    $region12: #{sae_forward.1} parent=5 // pred_fallthru
      _
    %p274 = scmp.lt.s32.totalorder %s15, 3
    // Predicated region
    $region45: #{sae_forward.1} parent=5 // pred_check
      %p275 = pneg %p274
    $region46: #{sae_forward.1} parent=5 // pred_check_branch
      %277 = sbr.rel (%p275) target = $region48
    $region47: #{sae_forward.1} parent=5 // pred_region
      // Predicated region
      $region49: #{sae_forward.1} parent=47 // pred_check
        %p278 = pneg %p35
      $region50: #{sae_forward.1} parent=47 // pred_check_branch
        %280 = sbr.rel (%p278) target = $region52
      $region51: #{sae_forward.1} parent=47 // pred_region
        %s281 = smul.u32 2, %s15
        %p282 = scmp.lt.s32.totalorder %s281, 5
        %s283 = scalar_select %p282, %s281, 5
        %s284 = smul.addr %s283, 8
        %s285 = scalar_lea.vmem %s0, %s284
        %s286 = smul.u32 2, %s15
      $region52: #{sae_forward.1} parent=47 // pred_fallthru
        _
    $region48: #{sae_forward.1} parent=5 // pred_fallthru
      _
    %p287 = scmp.le.s32.totalorder 1, %s15
    %p288 = scmp.lt.s32.totalorder %s15, 4
    %p289 = pnand %p287, %p288
    %p290 = pneg %p289
    // Predicated region
    $region53: #{sae_forward.1} parent=5 // pred_check
      _
    $region54: #{sae_forward.1} parent=5 // pred_check_branch
      %292 = sbr.rel (%p289) target = $region56
    $region55: #{sae_forward.1} parent=5 // pred_region
      %s293 = ssub.s32 %s15, 1
      %s294 = smul.u32 2, %s20
      %p295 = scmp.lt.s32.totalorder %s294, 5
      %s296 = scalar_select %p295, %s294, 5
      %s297 = smul.addr %s296, 8
      %s298 = scalar_lea.vmem %s0, %s297
      %p299 = pneg %p41
      %p300 = pneg %p38
      %p301 = pneg %p62
      %p302 = pneg %p59
      %p303 = pneg %p83
      %p304 = pneg %p80
      %p305 = pneg %p104
      %p306 = pneg %p101
      %p307 = pneg %p125
      %p308 = pneg %p122
      %p309 = pneg %p146
      %p310 = pneg %p143
      %p311 = pneg %p167
      %p312 = pneg %p164
      %p313 = pneg %p188
      %p314 = pneg %p185
      %p315 = pneg %p209
      %p316 = pneg %p206
      %p317 = pneg %p235
      %p318 = pneg %p232
      %s319 = smul.u32 2, %s20
      %p320 = scmp.lt.s32.totalorder %s319, 5
      %s321 = scalar_select %p320, %s319, 5
      %s322 = smul.addr %s321, 4
      %s323 = scalar_lea.vmem %s9, %s322
      %s324 = smul.u32 2, %s20
      %p325 = scmp.lt.s32.totalorder %s324, 5
      %s326 = scalar_select %p325, %s324, 5
      %s327 = smul.addr %s326, 8
      %s328 = scalar_lea.vmem %s0, %s327
      %s329 = smul.u32 2, %s20
      %s330 = smul.u32 2, %s20
      %p331 = scmp.lt.s32.totalorder %s330, 5
      %s332 = scalar_select %p331, %s330, 5
      %s333 = smul.addr %s332, 4
      %s334 = scalar_lea.vmem %s9, %s333
      %s335 = smul.u32 2, %s20
      %v337 = vld [vmem:[%s328] sm:$0xff]
      %v338 = vld [vmem:[%s328 + $0x8] sm:$0xff]
      %v339 = vpack.c.bf16 %v338, %v337
      %v340 = vld [vmem:[%s1] sm:$0xf]
      %v341 = vld [vmem:[%s1 + $0x4] sm:$0xf]
      %v342 = vld [vmem:[%s1 + $0x8] sm:$0xf]
      %v343 = vld [vmem:[%s1 + $0xc] sm:$0xf]
      %v344 = vld [vmem:[%s1 + $0x10] sm:$0xf]
      %v345 = vld [vmem:[%s1 + $0x14] sm:$0xf]
      %v346 = vld [vmem:[%s1 + $0x18] sm:$0xf]
      %v347 = vld [vmem:[%s1 + $0x1c] sm:$0xf]
      %v348 = vld [vmem:[%s1 + $0x20] sm:$0xf]
      %v349 = vld [vmem:[%s1 + $0x24] sm:$0xf]
      %v350 = vld [vmem:[%s1 + $0x28] sm:$0xf]
      %v351 = vld [vmem:[%s1 + $0x2c] sm:$0xf]
      %v352 = vld [vmem:[%s1 + $0x30] sm:$0xf]
      %v353 = vld [vmem:[%s1 + $0x34] sm:$0xf]
      %v354 = vld [vmem:[%s1 + $0x38] sm:$0xf]
      %v355 = vld [vmem:[%s1 + $0x3c] sm:$0xf]
      %v356 = vld [vmem:[%s2] sm:$0x1]
      %v358 = vlaneseq
      %v359 = vshrl.u32 %v358, 7
      %v360 = vsub.s32 0, %v359
      %v361 = vrot.slane %v356, %v360
      %v379 = vunpack.c.l.b16 %v340
      %v380 = vunpack.c.l.b16 %v341
      %v381 = vunpack.c.l.b16 %v342
      %v382 = vunpack.c.l.b16 %v343
      %v383 = vunpack.c.l.b16 %v344
      %v384 = vunpack.c.l.b16 %v345
      %v385 = vunpack.c.l.b16 %v346
      %v386 = vunpack.c.l.b16 %v347
      %v387 = vunpack.c.l.b16 %v348
      %v388 = vunpack.c.l.b16 %v349
      %v389 = vunpack.c.l.b16 %v350
      %v390 = vunpack.c.l.b16 %v351
      %v391 = vunpack.c.l.b16 %v352
      %v392 = vunpack.c.l.b16 %v353
      %v393 = vunpack.c.l.b16 %v354
      %v394 = vunpack.c.l.b16 %v355
      %v395 = vpack.c.b16 %v380, %v379
      %v396 = vpack.c.b16 %v382, %v381
      %v397 = vpack.c.b16 %v384, %v383
      %v398 = vpack.c.b16 %v386, %v385
      %v399 = vpack.c.b16 %v388, %v387
      %v400 = vpack.c.b16 %v390, %v389
      %v401 = vpack.c.b16 %v392, %v391
      %v402 = vpack.c.b16 %v394, %v393
      %411 = vmatprep.subr.bf16.mxu0 0
      %412 = vmatpush1.bf16.msra.mxu0 %v402
      %413 = vmatprep.subr.bf16.mxu0 0
      %414 = vmatpush1.bf16.msra.mxu0 %v401
      %415 = vmatprep.subr.bf16.mxu0 0
      %416 = vmatpush1.bf16.msra.mxu0 %v400
      %417 = vmatprep.subr.bf16.mxu0 0
      %418 = vmatpush1.bf16.msra.mxu0 %v399
      %419 = vmatprep.subr.bf16.mxu0 0
      %420 = vmatpush1.bf16.msra.mxu0 %v398
      %421 = vmatprep.subr.bf16.mxu0 0
      %422 = vmatpush1.bf16.msra.mxu0 %v397
      %423 = vmatprep.subr.bf16.mxu0 0
      %424 = vmatpush1.bf16.msra.mxu0 %v396
      %425 = vmatprep.subr.bf16.mxu0 0
      %426 = vmatpush1.bf16.msra.mxu0 %v395
      %427 = vmatprep.subr.bf16.mxu0 0
      %428 = vmatpush2.bf16.msra.mxu0 0
      %429 = vmatprep.subr.bf16.mxu0 0
      %430 = vmatpush2.bf16.msra.mxu0 0
      %431 = vmatprep.subr.bf16.mxu0 0
      %432 = vmatpush2.bf16.msra.mxu0 0
      %433 = vmatprep.subr.bf16.mxu0 0
      %434 = vmatpush2.bf16.msra.mxu0 0
      %435 = vmatprep.subr.bf16.mxu0 0
      %436 = vmatpush2.bf16.msra.mxu0 0
      %437 = vmatprep.subr.bf16.mxu0 0
      %438 = vmatpush2.bf16.msra.mxu0 0
      %439 = vmatprep.subr.bf16.mxu0 0
      %440 = vmatpush2.bf16.msra.mxu0 0
      %441 = vmatprep.subr.bf16.mxu0 0
      %442 = vmatpush2.bf16.msra.mxu0 0
      %443 = vmatprep.mubr.bf16.mxu0 0
      %444 = vmatmul.mubr.bf16.gmra.mxu0 %v339
      %v445 = vpop.f32.mrf.mxu0
      %v446 = vadd.f32 %v361, %v445
      %v447 = vpop.f32.mrf.mxu0
      %v448 = vpop.f32.mrf.mxu0
      %v449 = vadd.f32 %v361, %v448
      %v450 = vpop.f32.mrf.mxu0
      %451 = vdwg.mxu0
      %v452 = vxor.u32 %v446, 2147483648
      %v453 = vxor.u32 %v449, 2147483648
      %v454 = vmul.f32 %v452, 1.442695
      %v455 = vpow.pop %v454
      %v456 = vmul.f32 %v453, 1.442695
      %v457 = vpow.pop %v456
      %v458 = vadd.f32 %v455, 1.0
      %v459 = vadd.f32 %v457, 1.0
      %v460 = vrcp.pop %v458
      %v461 = vmul.f32 1.0, %v460
      %v462 = vrcp.pop %v459
      %v463 = vmul.f32 1.0, %v462
      %v464 = vld [vmem:[%s3] sm:$0xff]
      %v465 = vld [vmem:[%s3 + $0x8] sm:$0xff]
      %v466 = vld [vmem:[%s3 + $0x10] sm:$0xf]
      %v467 = vld [vmem:[%s4] sm:$0x1]
      %v469 = vlaneseq
      %v470 = vshrl.u32 %v469, 7
      %v471 = vsub.s32 0, %v470
      %v472 = vrot.slane %v467, %v471
      %vm474 = vcmask 162816
      %v476 = vsel %vm474, %v461, 0
      %v479 = vsel %vm474, %v463, 0
      %vm481 = vcmask 1043456
      %v483 = vsel %vm481, %v466, 0
      %485 = vmatprep.subr.mxu0 0.0
      %486 = vmatpush1.msra.mxu0 0.0
      %487 = vmatprep.subr.mxu0 0.0
      %488 = vmatpush1.msra.mxu0 0.0
      %489 = vmatprep.subr.mxu0 0.0
      %490 = vmatpush1.msra.mxu0 0.0
      %491 = vmatprep.subr.mxu0 0.0
      %492 = vmatpush1.msra.mxu0 0.0
      %493 = vmatprep.subr.mxu0 0.0
      %494 = vmatpush1.msra.mxu0 0.0
      %495 = vmatprep.subr.mxu0 0.0
      %496 = vmatpush1.msra.mxu0 0.0
      %497 = vmatprep.subr.mxu0 0.0
      %498 = vmatpush1.msra.mxu0 0.0
      %499 = vmatprep.subr.mxu0 0.0
      %500 = vmatpush1.msra.mxu0 0.0
      %501 = vmatprep.subr.mxu0 0.0
      %502 = vmatpush1.msra.mxu0 0.0
      %503 = vmatprep.subr.mxu0 0.0
      %504 = vmatpush1.msra.mxu0 0.0
      %505 = vmatprep.subr.mxu0 0.0
      %506 = vmatpush1.msra.mxu0 0.0
      %507 = vmatprep.subr.mxu0 0.0
      %508 = vmatpush1.msra.mxu0 0.0
      %509 = vmatprep.subr.mxu0 0.0
      %510 = vmatpush1.msra.mxu0 0.0
      %511 = vmatprep.subr.mxu0 0.0
      %512 = vmatpush1.msra.mxu0 %v483
      %513 = vmatprep.subr.mxu0 0.0
      %514 = vmatpush1.msra.mxu0 %v465
      %515 = vmatprep.subr.mxu0 0.0
      %516 = vmatpush1.msra.mxu0 %v464
      %517 = vmatprep.subr.mxu0 0.0
      %518 = vmatpush2.msra.mxu0 0.0
      %519 = vmatprep.subr.mxu0 0.0
      %520 = vmatpush2.msra.mxu0 0.0
      %521 = vmatprep.subr.mxu0 0.0
      %522 = vmatpush2.msra.mxu0 0.0
      %523 = vmatprep.subr.mxu0 0.0
      %524 = vmatpush2.msra.mxu0 0.0
      %525 = vmatprep.subr.mxu0 0.0
      %526 = vmatpush2.msra.mxu0 0.0
      %527 = vmatprep.subr.mxu0 0.0
      %528 = vmatpush2.msra.mxu0 0.0
      %529 = vmatprep.subr.mxu0 0.0
      %530 = vmatpush2.msra.mxu0 0.0
      %531 = vmatprep.subr.mxu0 0.0
      %532 = vmatpush2.msra.mxu0 0.0
      %533 = vmatprep.subr.mxu0 0.0
      %534 = vmatpush2.msra.mxu0 0.0
      %535 = vmatprep.subr.mxu0 0.0
      %536 = vmatpush2.msra.mxu0 0.0
      %537 = vmatprep.subr.mxu0 0.0
      %538 = vmatpush2.msra.mxu0 0.0
      %539 = vmatprep.subr.mxu0 0.0
      %540 = vmatpush2.msra.mxu0 0.0
      %541 = vmatprep.subr.mxu0 0.0
      %542 = vmatpush2.msra.mxu0 0.0
      %543 = vmatprep.subr.mxu0 0.0
      %544 = vmatpush2.msra.mxu0 0.0
      %545 = vmatprep.subr.mxu0 0.0
      %546 = vmatpush2.msra.mxu0 0.0
      %547 = vmatprep.subr.mxu0 0.0
      %548 = vmatpush2.msra.mxu0 0.0
      %549 = vmatprep.mubr.f32.mxu0 0.0
      %550 = vmatmul.mubr.f32.gmra.mxu0 %v476
      %v551 = vpop.f32.mrf.mxu0
      %v552 = vadd.f32 %v472, %v551
      %v553 = vpop.f32.mrf.mxu0
      %554 = vmatprep.mubr.f32.mxu0 0.0
      %555 = vmatmul.mubr.f32.gmra.mxu0 %v479
      %v556 = vpop.f32.mrf.mxu0
      %v557 = vadd.f32 %v472, %v556
      %v558 = vpop.f32.mrf.mxu0
      %559 = vdwg.mxu0
      %v560 = vxor.u32 %v552, 2147483648
      %v561 = vxor.u32 %v557, 2147483648
      %v562 = vmul.f32 %v560, 1.442695
      %v563 = vpow.pop %v562
      %v564 = vmul.f32 %v561, 1.442695
      %v565 = vpow.pop %v564
      %v566 = vadd.f32 %v563, 1.0
      %v567 = vadd.f32 %v565, 1.0
      %v568 = vrcp.pop %v566
      %v569 = vmul.f32 1.0, %v568
      %v570 = vrcp.pop %v567
      %v571 = vmul.f32 1.0, %v570
      %v572 = vld [vmem:[%s5] sm:$0xff]
      %v573 = vld [vmem:[%s5 + $0x8] sm:$0x3]
      %v574 = vld [vmem:[%s6] sm:$0x1]
      %v576 = vlaneseq
      %v577 = vshrl.u32 %v576, 7
      %v578 = vsub.s32 0, %v577
      %v579 = vrot.slane %v574, %v578
      %vm581 = vcmask 80896
      %v583 = vsel %vm581, %v569, 0
      %v586 = vsel %vm581, %v571, 0
      %vm588 = vcmask 1041408
      %v590 = vsel %vm588, %v573, 0
      %592 = vmatprep.subr.mxu0 0.0
      %593 = vmatpush1.msra.mxu0 0.0
      %594 = vmatprep.subr.mxu0 0.0
      %595 = vmatpush1.msra.mxu0 0.0
      %596 = vmatprep.subr.mxu0 0.0
      %597 = vmatpush1.msra.mxu0 0.0
      %598 = vmatprep.subr.mxu0 0.0
      %599 = vmatpush1.msra.mxu0 0.0
      %600 = vmatprep.subr.mxu0 0.0
      %601 = vmatpush1.msra.mxu0 0.0
      %602 = vmatprep.subr.mxu0 0.0
      %603 = vmatpush1.msra.mxu0 0.0
      %604 = vmatprep.subr.mxu0 0.0
      %605 = vmatpush1.msra.mxu0 0.0
      %606 = vmatprep.subr.mxu0 0.0
      %607 = vmatpush1.msra.mxu0 0.0
      %608 = vmatprep.subr.mxu0 0.0
      %609 = vmatpush1.msra.mxu0 0.0
      %610 = vmatprep.subr.mxu0 0.0
      %611 = vmatpush1.msra.mxu0 0.0
      %612 = vmatprep.subr.mxu0 0.0
      %613 = vmatpush1.msra.mxu0 0.0
      %614 = vmatprep.subr.mxu0 0.0
      %615 = vmatpush1.msra.mxu0 0.0
      %616 = vmatprep.subr.mxu0 0.0
      %617 = vmatpush1.msra.mxu0 0.0
      %618 = vmatprep.subr.mxu0 0.0
      %619 = vmatpush1.msra.mxu0 0.0
      %620 = vmatprep.subr.mxu0 0.0
      %621 = vmatpush1.msra.mxu0 %v590
      %622 = vmatprep.subr.mxu0 0.0
      %623 = vmatpush1.msra.mxu0 %v572
      %624 = vmatprep.subr.mxu0 0.0
      %625 = vmatpush2.msra.mxu0 0.0
      %626 = vmatprep.subr.mxu0 0.0
      %627 = vmatpush2.msra.mxu0 0.0
      %628 = vmatprep.subr.mxu0 0.0
      %629 = vmatpush2.msra.mxu0 0.0
      %630 = vmatprep.subr.mxu0 0.0
      %631 = vmatpush2.msra.mxu0 0.0
      %632 = vmatprep.subr.mxu0 0.0
      %633 = vmatpush2.msra.mxu0 0.0
      %634 = vmatprep.subr.mxu0 0.0
      %635 = vmatpush2.msra.mxu0 0.0
      %636 = vmatprep.subr.mxu0 0.0
      %637 = vmatpush2.msra.mxu0 0.0
      %638 = vmatprep.subr.mxu0 0.0
      %639 = vmatpush2.msra.mxu0 0.0
      %640 = vmatprep.subr.mxu0 0.0
      %641 = vmatpush2.msra.mxu0 0.0
      %642 = vmatprep.subr.mxu0 0.0
      %643 = vmatpush2.msra.mxu0 0.0
      %644 = vmatprep.subr.mxu0 0.0
      %645 = vmatpush2.msra.mxu0 0.0
      %646 = vmatprep.subr.mxu0 0.0
      %647 = vmatpush2.msra.mxu0 0.0
      %648 = vmatprep.subr.mxu0 0.0
      %649 = vmatpush2.msra.mxu0 0.0
      %650 = vmatprep.subr.mxu0 0.0
      %651 = vmatpush2.msra.mxu0 0.0
      %652 = vmatprep.subr.mxu0 0.0
      %653 = vmatpush2.msra.mxu0 0.0
      %654 = vmatprep.subr.mxu0 0.0
      %655 = vmatpush2.msra.mxu0 0.0
      %656 = vmatprep.mubr.f32.mxu0 0.0
      %657 = vmatmul.mubr.f32.gmra.mxu0 %v583
      %v658 = vpop.f32.mrf.mxu0
      %v659 = vadd.f32 %v579, %v658
      %v660 = vpop.f32.mrf.mxu0
      %661 = vmatprep.mubr.f32.mxu0 0.0
      %662 = vmatmul.mubr.f32.gmra.mxu0 %v586
      %v663 = vpop.f32.mrf.mxu0
      %v664 = vadd.f32 %v579, %v663
      %v665 = vpop.f32.mrf.mxu0
      %666 = vdwg.mxu0
      %v667 = vxor.u32 %v659, 2147483648
      %v668 = vxor.u32 %v664, 2147483648
      %v669 = vmul.f32 %v667, 1.442695
      %v670 = vpow.pop %v669
      %v671 = vmul.f32 %v668, 1.442695
      %v672 = vpow.pop %v671
      %v673 = vadd.f32 %v670, 1.0
      %v674 = vadd.f32 %v672, 1.0
      %v675 = vrcp.pop %v673
      %v676 = vmul.f32 1.0, %v675
      %v677 = vrcp.pop %v674
      %v678 = vmul.f32 1.0, %v677
      %v679 = vpack.c.bf16 %v678, %v676
      %v680 = vld [vmem:[%s7] sm:$0xf]
      %v681 = vld [vmem:[%s7 + $0x4] sm:$0xf]
      %v682 = vld [vmem:[%s7 + $0x8] sm:$0x3]
      %v683 = vld [vmem:[%s8] sm:$0x1]
      %v685 = vlaneseq
      %v686 = vshrl.u32 %v685, 7
      %v687 = vsub.s32 0, %v686
      %v688 = vrot.slane %v683, %v687
      %v693 = vunpack.c.l.b16 %v680
      %v694 = vunpack.c.l.b16 %v681
      %v695 = vunpack.c.l.b16 %v682
      %v696 = vpack.c.b16 %v694, %v693
      %v697 = vpack.c.b16 %v695, %v695
      %v700 = vsel %vm474, %v679, 0
      %v703 = vsel %vm588, %v697, 0
      %705 = vmatprep.subr.bf16.mxu0 0
      %706 = vmatpush1.bf16.msra.mxu0 0
      %707 = vmatprep.subr.bf16.mxu0 0
      %708 = vmatpush1.bf16.msra.mxu0 0
      %709 = vmatprep.subr.bf16.mxu0 0
      %710 = vmatpush1.bf16.msra.mxu0 0
      %711 = vmatprep.subr.bf16.mxu0 0
      %712 = vmatpush1.bf16.msra.mxu0 0
      %713 = vmatprep.subr.bf16.mxu0 0
      %714 = vmatpush1.bf16.msra.mxu0 0
      %715 = vmatprep.subr.bf16.mxu0 0
      %716 = vmatpush1.bf16.msra.mxu0 0
      %717 = vmatprep.subr.bf16.mxu0 0
      %718 = vmatpush1.bf16.msra.mxu0 %v703
      %719 = vmatprep.subr.bf16.mxu0 0
      %720 = vmatpush1.bf16.msra.mxu0 %v696
      %721 = vmatprep.subr.bf16.mxu0 0
      %722 = vmatpush2.bf16.msra.mxu0 0
      %723 = vmatprep.subr.bf16.mxu0 0
      %724 = vmatpush2.bf16.msra.mxu0 0
      %725 = vmatprep.subr.bf16.mxu0 0
      %726 = vmatpush2.bf16.msra.mxu0 0
      %727 = vmatprep.subr.bf16.mxu0 0
      %728 = vmatpush2.bf16.msra.mxu0 0
      %729 = vmatprep.subr.bf16.mxu0 0
      %730 = vmatpush2.bf16.msra.mxu0 0
      %731 = vmatprep.subr.bf16.mxu0 0
      %732 = vmatpush2.bf16.msra.mxu0 0
      %733 = vmatprep.subr.bf16.mxu0 0
      %734 = vmatpush2.bf16.msra.mxu0 0
      %735 = vmatprep.subr.bf16.mxu0 0
      %736 = vmatpush2.bf16.msra.mxu0 0
      %737 = vmatprep.mubr.bf16.mxu0 0
      %738 = vmatmul.mubr.bf16.gmra.mxu0 %v700
      %v739 = vpop.f32.mrf.mxu0
      %v740 = vadd.f32 %v688, %v739
      %v741 = vpop.f32.mrf.mxu0
      %v742 = vpop.f32.mrf.mxu0
      %v743 = vadd.f32 %v688, %v742
      %v744 = vpop.f32.mrf.mxu0
      %745 = vdwg.mxu0
      %v746 = vpack.c.bf16 %v743, %v740
      %v748 = vunpack.c.l.b16 %v746
      %v749 = vunpack.c.h.b16 %v746
      %v750 = vpack.c.b16 %v748, %v748
      %v751 = vpack.c.b16 %v749, %v749
      %754 = vst [vmem:[%s334] sm:$0xf] %v750
      %755 = vst [vmem:[%s334 + $0x4] sm:$0xf] %v751
      %s756 = smul.u32 2, %s20
      %p757 = scmp.lt.s32.totalorder %s756, 5
      %s758 = scalar_select %p757, %s756, 5
      %s759 = smul.addr %s758, 4
      %s760 = scalar_lea.vmem %s9, %s759
      // Predicated region
      $region57: #{sae_forward.1} parent=55 // pred_check
        %p761 = pneg %p232
      $region58: #{sae_forward.1} parent=55 // pred_check_branch
        %763 = sbr.rel (%p761) target = $region60
      $region59: #{sae_forward.1} parent=55 // pred_region
        %s764 = smul.u32 2, %s20
      $region60: #{sae_forward.1} parent=55 // pred_fallthru
        _
    $region56: #{sae_forward.1} parent=5 // pred_fallthru
      _
    %p765 = scmp.le.s32.totalorder 2, %s15
    // Predicated region
    $region61: #{sae_forward.1} parent=5 // pred_check
      %p766 = pneg %p765
    $region62: #{sae_forward.1} parent=5 // pred_check_branch
      %768 = sbr.rel (%p766) target = $region64
    $region63: #{sae_forward.1} parent=5 // pred_region
      %s769 = ssub.s32 %s15, 2
      // Predicated region
      $region65: #{sae_forward.1} parent=63 // pred_check
        %p770 = pneg %p238
      $region66: #{sae_forward.1} parent=63 // pred_check_branch
        %772 = sbr.rel (%p770) target = $region68
      $region67: #{sae_forward.1} parent=63 // pred_region
        %s773 = smul.u32 2, %s21
        %p774 = scmp.lt.s32.totalorder %s773, 5
        %s775 = scalar_select %p774, %s773, 5
        %s776 = smul.addr %s775, 4
        %s777 = scalar_lea.vmem %s9, %s776
      $region68: #{sae_forward.1} parent=63 // pred_fallthru
        _
    $region64: #{sae_forward.1} parent=5 // pred_fallthru
      _
  $region6: #{sae_forward.1} parent=0 // loop_footer
    %s19 = sadd.s32 1, %s15
  $region7: #{sae_forward.1} parent=0 // loop_footer_branch
    %14 = sbr.rel target = $region3
  $region8: #{sae_forward.1} parent=0 // loop_exit
    _

</llo_original>
